<compile_context>
chip_gen: v5e
topology: v5e:2x2
jax: 0.10.0
libtpu: 0.0.40
codegen_flags: <defaults>
</compile_context>

<pallas_src>
import functools
import math

import jax
import jax.numpy as jnp
from jax.experimental import pallas as pl
from jax.experimental.pallas import tpu as pltpu


def _softplus(x):
    # Matches torch.nn.Softplus(beta=1, threshold=20):
    #   x > 20 -> x ; else -> log(1 + exp(x)).  One exp + one log1p per element.
    safe = jnp.minimum(x, 20.0)
    return jnp.where(x > 20.0, x, jnp.log1p(jnp.exp(safe)))


def _recurrence_mlp_kernel(x_ref, t_ref,
                           w1a_ref, w1t_ref, b1_ref,
                           w2_ref, b2_ref,
                           w3_ref, b3_ref,
                           o_ref):
    # x_ref : (S, TM)  features-on-sublanes, rows-on-lanes
    # t_ref : (1, TM)  time value per row
    # w*_ref: weights transposed to (out, in); biases as (out, 1)
    # o_ref : (Sout, TM)
    h = jnp.dot(w1a_ref[...], x_ref[...], preferred_element_type=jnp.float32)
    h = h + w1t_ref[...] * t_ref[...] + b1_ref[...]   # time column folded into layer 1
    h = _softplus(h)
    h = jnp.dot(w2_ref[...], h, preferred_element_type=jnp.float32) + b2_ref[...]
    h = _softplus(h)
    h = jnp.dot(w3_ref[...], h, preferred_element_type=jnp.float32) + b3_ref[...]
    # Final activation is ReLU (last Softplus replaced in __init__).
    o_ref[...] = jnp.maximum(h, 0.0)


def recurrence_forward(x, t_schedule, params, *, tile_cols=512):
    """x: [..., T, S] float32, t_schedule: [T] float32.  Returns [..., T, S]."""
    w1, b1, w2, b2, w3, b3 = params
    S = x.shape[-1]
    T = x.shape[-2]
    assert t_schedule.shape == (T,)
    assert w1.shape[0] == S + 1

    lead = x.shape[:-2]
    B = int(math.prod(lead)) if lead else 1
    N = B * T

    H1 = w1.shape[1]
    H2 = w2.shape[1]
    Sout = w3.shape[1]

    TM = int(tile_cols)
    assert TM % 128 == 0, "tile_cols must be a multiple of 128 (lane width)"

    # --- wrapper-side layout plumbing (cheap relative to the kernel body) ---
    xT = x.reshape(N, S).astype(jnp.float32).T                       # (S, N)
    tN = jnp.broadcast_to(t_schedule.astype(jnp.float32)[None, :],
                          (B, T)).reshape(1, N)                      # (1, N), row n -> t[n % T]

    n_tiles = pl.cdiv(N, TM)
    Npad = n_tiles * TM
    pad = Npad - N
    if pad:
        xT = jnp.pad(xT, ((0, 0), (0, pad)))
        tN = jnp.pad(tN, ((0, 0), (0, pad)))

    # Split W1 into its x-part and time-row; pass everything as (out, in) / (out, 1).
    w1a_t = jnp.asarray(w1, jnp.float32)[:S, :].T                    # (H1, S)
    w1t_c = jnp.asarray(w1, jnp.float32)[S, :].reshape(H1, 1)        # (H1, 1)
    b1_c = jnp.asarray(b1, jnp.float32).reshape(H1, 1)
    w2_t = jnp.asarray(w2, jnp.float32).T                            # (H2, H1)
    b2_c = jnp.asarray(b2, jnp.float32).reshape(H2, 1)
    w3_t = jnp.asarray(w3, jnp.float32).T                            # (Sout, H2)
    b3_c = jnp.asarray(b3, jnp.float32).reshape(Sout, 1)

    cost = pl.CostEstimate(
        flops=2 * N * (S * H1 + H1 * H2 + H2 * Sout),
        transcendentals=2 * N * (H1 + H2),                           # exp + log1p per hidden unit
        bytes_accessed=4 * (N * (S + 1 + Sout)
                            + (S + 1) * H1 + H1 * H2 + H2 * Sout
                            + H1 + H2 + Sout),
    )

    outT = pl.pallas_call(
        _recurrence_mlp_kernel,
        out_shape=jax.ShapeDtypeStruct((Sout, Npad), jnp.float32),
        grid_spec=pltpu.PrefetchScalarGridSpec(
            num_scalar_prefetch=0,
            grid=(n_tiles,),
            in_specs=[
                pl.BlockSpec((S, TM), lambda i: (0, i)),      # x tile (lane-dense)
                pl.BlockSpec((1, TM), lambda i: (0, i)),      # time row
                pl.BlockSpec((H1, S), lambda i: (0, 0)),      # W1[:S].T
                pl.BlockSpec((H1, 1), lambda i: (0, 0)),      # W1[S]
                pl.BlockSpec((H1, 1), lambda i: (0, 0)),      # b1
                pl.BlockSpec((H2, H1), lambda i: (0, 0)),     # W2.T
                pl.BlockSpec((H2, 1), lambda i: (0, 0)),      # b2
                pl.BlockSpec((Sout, H2), lambda i: (0, 0)),   # W3.T
                pl.BlockSpec((Sout, 1), lambda i: (0, 0)),    # b3
            ],
            out_specs=pl.BlockSpec((Sout, TM), lambda i: (0, i)),
        ),
        compiler_params=pltpu.CompilerParams(
            dimension_semantics=("parallel",),
            vmem_limit_bytes=32 * 1024 * 1024,
        ),
        cost_estimate=cost,
    )(xT, tN, w1a_t, w1t_c, b1_c, w2_t, b2_c, w3_t, b3_c)

    out = outT[:, :N].T.reshape(lead + (T, Sout))
    return out


def init_params(key, state_space_size, recurrence_hidden_layers):
    """Deterministic init matching nn.Linear default (uniform +-1/sqrt(fan_in))."""
    all_sizes = [state_space_size + 1] + list(recurrence_hidden_layers) + [state_space_size]
    params = []
    for i in range(len(all_sizes) - 1):
        fan_in, fan_out = all_sizes[i], all_sizes[i + 1]
        key, kw, kb = jax.random.split(key, 3)
        bound = 1.0 / math.sqrt(fan_in)
        # Stored as [in, out] (transposed relative to torch) for the reference matmul.
        w = jax.random.uniform(kw, (fan_in, fan_out), jnp.float32, -bound, bound)
        b = jax.random.uniform(kb, (fan_out,), jnp.float32, -bound, bound)
        params.extend([w, b])
    return tuple(params)


def reference_forward(x, t_schedule, params):
    """Pure-JAX reference replicating the PyTorch module semantics."""
    w1, b1, w2, b2, w3, b3 = params
    lead = x.shape[:-2]
    T = x.shape[-2]
    t_b = jnp.broadcast_to(t_schedule.reshape((1,) * len(lead) + (T, 1)),
                           lead + (T, 1))
    h = jnp.concatenate([x, t_b], axis=-1)
    h = jax.nn.softplus(h @ w1 + b1)
    h = jax.nn.softplus(h @ w2 + b2)
    h = jnp.maximum(h @ w3 + b3, 0.0)
    return h


def _check(x, t_schedule, params, name):
    out = jax.block_until_ready(recurrence_forward(x, t_schedule, params))
    ref = reference_forward(x, t_schedule, params)
    assert out.shape == ref.shape, (name, out.shape, ref.shape)
    assert jnp.allclose(out, ref, atol=3e-5, rtol=3e-5), f"mismatch vs reference: {name}"


if __name__ == "__main__":
    state_space_size = 4
    recurrence_hidden_layers = [32, 32]
    T = 8

    key = jax.random.PRNGKey(0)
    kx1, kx2, kx3, kt, kp = jax.random.split(key, 5)

    t_schedule = jax.random.uniform(kt, (T,), jnp.float32)
    params = init_params(kp, state_space_size, recurrence_hidden_layers)

    # Small case: single padded tile.
    x1 = jax.random.normal(kx1, (2, T, state_space_size), jnp.float32)
    _check(x1, t_schedule, params, "batch=2")

    # Multi-dim leading shape with N not a multiple of the tile width.
    x2 = jax.random.normal(kx2, (3, 5, T, state_space_size), jnp.float32)
    _check(x2, t_schedule, params, "lead=(3,5)")

    # Multi-tile grid (N = 1280 -> 3 grid steps at TM=512, exercises padding + parallel axis).
    x3 = jax.random.normal(kx3, (160, T, state_space_size), jnp.float32)
    _check(x3, t_schedule, params, "batch=160")

    print("KERNEL_OK")
</pallas_src>

<mosaic_0001>
module attributes {stable_mosaic.version = 11 : i64} {
  func.func @_recurrence_mlp_kernel(%arg0: i32, %arg1: memref<4x512xf32, #tpu.memory_space<vmem>>, %arg2: memref<1x512xf32, #tpu.memory_space<vmem>>, %arg3: memref<32x4xf32, #tpu.memory_space<vmem>>, %arg4: memref<32x1xf32, #tpu.memory_space<vmem>>, %arg5: memref<32x1xf32, #tpu.memory_space<vmem>>, %arg6: memref<32x32xf32, #tpu.memory_space<vmem>>, %arg7: memref<32x1xf32, #tpu.memory_space<vmem>>, %arg8: memref<4x32xf32, #tpu.memory_space<vmem>>, %arg9: memref<4x1xf32, #tpu.memory_space<vmem>>, %arg10: memref<4x512xf32, #tpu.memory_space<vmem>>) attributes {dimension_semantics = [#tpu.dimension_semantics<parallel>], iteration_bounds = array<i64: 1>, scalar_prefetch = 0 : i64, scratch_operands = 0 : i64, tpu.core_type = #tpu.core_type<tc>, window_params = [{transform_indices = @transform_0, window_bounds = array<i64: 4, 512>}, {transform_indices = @transform_1, window_bounds = array<i64: 1, 512>}, {pipeline_mode = #tpu.pipeline_mode<synchronous>, transform_indices = @transform_2, window_bounds = array<i64: 32, 4>}, {pipeline_mode = #tpu.pipeline_mode<synchronous>, transform_indices = @transform_3, window_bounds = array<i64: 32, 1>}, {pipeline_mode = #tpu.pipeline_mode<synchronous>, transform_indices = @transform_4, window_bounds = array<i64: 32, 1>}, {pipeline_mode = #tpu.pipeline_mode<synchronous>, transform_indices = @transform_5, window_bounds = array<i64: 32, 32>}, {pipeline_mode = #tpu.pipeline_mode<synchronous>, transform_indices = @transform_6, window_bounds = array<i64: 32, 1>}, {pipeline_mode = #tpu.pipeline_mode<synchronous>, transform_indices = @transform_7, window_bounds = array<i64: 4, 32>}, {pipeline_mode = #tpu.pipeline_mode<synchronous>, transform_indices = @transform_8, window_bounds = array<i64: 4, 1>}, {transform_indices = @transform_9, window_bounds = array<i64: 4, 512>}]} {
    %c0 = arith.constant 0 : index
    %c0_0 = arith.constant 0 : index
    %0 = vector.load %arg3[%c0, %c0_0] : memref<32x4xf32, #tpu.memory_space<vmem>>, vector<32x4xf32>
    %c0_1 = arith.constant 0 : index
    %c0_2 = arith.constant 0 : index
    %1 = vector.load %arg1[%c0_1, %c0_2] : memref<4x512xf32, #tpu.memory_space<vmem>>, vector<4x512xf32>
    %cst = arith.constant dense<0.000000e+00> : vector<32x512xf32>
    %2 = tpu.matmul %0, %1, %cst {dimension_numbers = #tpu.dot_dimension_numbers<[1], [0], [0], [1], [0, 0, 1, 1], [], []>} : vector<32x4xf32>, vector<4x512xf32>, vector<32x512xf32> -> vector<32x512xf32>
    %c0_3 = arith.constant 0 : index
    %c0_4 = arith.constant 0 : index
    %3 = vector.load %arg4[%c0_3, %c0_4] : memref<32x1xf32, #tpu.memory_space<vmem>>, vector<32x1xf32>
    %c0_5 = arith.constant 0 : index
    %c0_6 = arith.constant 0 : index
    %4 = vector.load %arg2[%c0_5, %c0_6] : memref<1x512xf32, #tpu.memory_space<vmem>>, vector<1x512xf32>
    %5 = vector.broadcast %3 : vector<32x1xf32> to vector<32x512xf32>
    %6 = vector.broadcast %4 : vector<1x512xf32> to vector<32x512xf32>
    %7 = arith.mulf %5, %6 : vector<32x512xf32>
    %8 = arith.addf %2, %7 : vector<32x512xf32>
    %c0_7 = arith.constant 0 : index
    %c0_8 = arith.constant 0 : index
    %9 = vector.load %arg5[%c0_7, %c0_8] : memref<32x1xf32, #tpu.memory_space<vmem>>, vector<32x1xf32>
    %10 = vector.broadcast %9 : vector<32x1xf32> to vector<32x512xf32>
    %11 = arith.addf %8, %10 : vector<32x512xf32>
    %cst_9 = arith.constant 2.000000e+01 : f32
    %12 = vector.broadcast %cst_9 : f32 to vector<32x512xf32>
    %13 = arith.minimumf %11, %12 : vector<32x512xf32>
    %cst_10 = arith.constant 2.000000e+01 : f32
    %14 = vector.broadcast %cst_10 : f32 to vector<32x512xf32>
    %15 = arith.cmpf ogt, %11, %14 : vector<32x512xf32>
    %16 = math.exp %13 : vector<32x512xf32>
    %17 = math.log1p %16 : vector<32x512xf32>
    %18 = arith.select %15, %11, %17 : vector<32x512xi1>, vector<32x512xf32>
    %c0_11 = arith.constant 0 : index
    %c0_12 = arith.constant 0 : index
    %19 = vector.load %arg6[%c0_11, %c0_12] : memref<32x32xf32, #tpu.memory_space<vmem>>, vector<32x32xf32>
    %cst_13 = arith.constant dense<0.000000e+00> : vector<32x512xf32>
    %20 = tpu.matmul %19, %18, %cst_13 {dimension_numbers = #tpu.dot_dimension_numbers<[1], [0], [0], [1], [0, 0, 1, 1], [], []>} : vector<32x32xf32>, vector<32x512xf32>, vector<32x512xf32> -> vector<32x512xf32>
    %c0_14 = arith.constant 0 : index
    %c0_15 = arith.constant 0 : index
    %21 = vector.load %arg7[%c0_14, %c0_15] : memref<32x1xf32, #tpu.memory_space<vmem>>, vector<32x1xf32>
    %22 = vector.broadcast %21 : vector<32x1xf32> to vector<32x512xf32>
    %23 = arith.addf %20, %22 : vector<32x512xf32>
    %cst_16 = arith.constant 2.000000e+01 : f32
    %24 = vector.broadcast %cst_16 : f32 to vector<32x512xf32>
    %25 = arith.minimumf %23, %24 : vector<32x512xf32>
    %cst_17 = arith.constant 2.000000e+01 : f32
    %26 = vector.broadcast %cst_17 : f32 to vector<32x512xf32>
    %27 = arith.cmpf ogt, %23, %26 : vector<32x512xf32>
    %28 = math.exp %25 : vector<32x512xf32>
    %29 = math.log1p %28 : vector<32x512xf32>
    %30 = arith.select %27, %23, %29 : vector<32x512xi1>, vector<32x512xf32>
    %c0_18 = arith.constant 0 : index
    %c0_19 = arith.constant 0 : index
    %31 = vector.load %arg8[%c0_18, %c0_19] : memref<4x32xf32, #tpu.memory_space<vmem>>, vector<4x32xf32>
    %cst_20 = arith.constant dense<0.000000e+00> : vector<4x512xf32>
    %32 = tpu.matmul %31, %30, %cst_20 {dimension_numbers = #tpu.dot_dimension_numbers<[1], [0], [0], [1], [0, 0, 1, 1], [], []>} : vector<4x32xf32>, vector<32x512xf32>, vector<4x512xf32> -> vector<4x512xf32>
    %c0_21 = arith.constant 0 : index
    %c0_22 = arith.constant 0 : index
    %33 = vector.load %arg9[%c0_21, %c0_22] : memref<4x1xf32, #tpu.memory_space<vmem>>, vector<4x1xf32>
    %34 = vector.broadcast %33 : vector<4x1xf32> to vector<4x512xf32>
    %35 = arith.addf %32, %34 : vector<4x512xf32>
    %cst_23 = arith.constant 0.000000e+00 : f32
    %36 = vector.broadcast %cst_23 : f32 to vector<4x512xf32>
    %37 = arith.maximumf %35, %36 : vector<4x512xf32>
    %c0_24 = arith.constant 0 : index
    %c0_25 = arith.constant 0 : index
    %38 = vector.load %arg10[%c0_24, %c0_25] : memref<4x512xf32, #tpu.memory_space<vmem>>, vector<4x512xf32>
    tpu.vector_store %arg10[%c0_24, %c0_25], %37 {strides = array<i32>} : memref<4x512xf32, #tpu.memory_space<vmem>>, vector<4x512xf32>,
    return
  }
  func.func @transform_0(%arg0: i32) -> (i32, i32) {
    %c0_i32 = arith.constant 0 : i32
    %c0_i32_0 = arith.constant 0 : i32
    return %c0_i32, %arg0 : i32, i32
  }
  func.func @transform_1(%arg0: i32) -> (i32, i32) {
    %c0_i32 = arith.constant 0 : i32
    %c0_i32_0 = arith.constant 0 : i32
    return %c0_i32, %arg0 : i32, i32
  }
  func.func @transform_2(%arg0: i32) -> (i32, i32) {
    %c0_i32 = arith.constant 0 : i32
    %c0_i32_0 = arith.constant 0 : i32
    %c0_i32_1 = arith.constant 0 : i32
    return %c0_i32, %c0_i32_0 : i32, i32
  }
  func.func @transform_3(%arg0: i32) -> (i32, i32) {
    %c0_i32 = arith.constant 0 : i32
    %c0_i32_0 = arith.constant 0 : i32
    %c0_i32_1 = arith.constant 0 : i32
    return %c0_i32, %c0_i32_0 : i32, i32
  }
  func.func @transform_4(%arg0: i32) -> (i32, i32) {
    %c0_i32 = arith.constant 0 : i32
    %c0_i32_0 = arith.constant 0 : i32
    %c0_i32_1 = arith.constant 0 : i32
    return %c0_i32, %c0_i32_0 : i32, i32
  }
  func.func @transform_5(%arg0: i32) -> (i32, i32) {
    %c0_i32 = arith.constant 0 : i32
    %c0_i32_0 = arith.constant 0 : i32
    %c0_i32_1 = arith.constant 0 : i32
    return %c0_i32, %c0_i32_0 : i32, i32
  }
  func.func @transform_6(%arg0: i32) -> (i32, i32) {
    %c0_i32 = arith.constant 0 : i32
    %c0_i32_0 = arith.constant 0 : i32
    %c0_i32_1 = arith.constant 0 : i32
    return %c0_i32, %c0_i32_0 : i32, i32
  }
  func.func @transform_7(%arg0: i32) -> (i32, i32) {
    %c0_i32 = arith.constant 0 : i32
    %c0_i32_0 = arith.constant 0 : i32
    %c0_i32_1 = arith.constant 0 : i32
    return %c0_i32, %c0_i32_0 : i32, i32
  }
  func.func @transform_8(%arg0: i32) -> (i32, i32) {
    %c0_i32 = arith.constant 0 : i32
    %c0_i32_0 = arith.constant 0 : i32
    %c0_i32_1 = arith.constant 0 : i32
    return %c0_i32, %c0_i32_0 : i32, i32
  }
  func.func @transform_9(%arg0: i32) -> (i32, i32) {
    %c0_i32 = arith.constant 0 : i32
    %c0_i32_0 = arith.constant 0 : i32
    return %c0_i32, %arg0 : i32, i32
  }
}

</mosaic_0001>

<llo_original>
// kernel: tpu_custom_call.1
$region0: #{tpu_custom_call.1}
  #allocation0 [shape = 'u32[]', space=smem, size = 0x4, offset = 0x4, fixed_abs, tag = 'smem constant byte address 0x4 - core index']
  #allocation1 [shape = 'u32[72,128]{1,0:T(1,128)}', space=vmem, size = 0x9000, scoped, tag = 'internal scratch']
  %s0 = inlined_call_operand.vmem [shape: f32[4,512], index: 0, kind: input, shape index: {}]
  %s1 = inlined_call_operand.vmem [shape: f32[1,512], index: 1, kind: input, shape index: {}]
  %s2 = inlined_call_operand.vmem [shape: f32[32,4], index: 2, kind: input, shape index: {}]
  %s3 = inlined_call_operand.vmem [shape: f32[32,1], index: 3, kind: input, shape index: {}]
  %s4 = inlined_call_operand.vmem [shape: f32[32,1], index: 4, kind: input, shape index: {}]
  %s5 = inlined_call_operand.vmem [shape: f32[32,32], index: 5, kind: input, shape index: {}]
  %s6 = inlined_call_operand.vmem [shape: f32[32,1], index: 6, kind: input, shape index: {}]
  %s7 = inlined_call_operand.vmem [shape: f32[4,32], index: 7, kind: input, shape index: {}]
  %s8 = inlined_call_operand.vmem [shape: f32[4,1], index: 8, kind: input, shape index: {}]
  %s9 = inlined_call_operand.hbm [shape: f32[4,512], index: 9, kind: output, shape index: {}]
  %s10 = sld [smem:[#allocation0]]
  $region46: #{tpu_custom_call.1} parent=0
    _
  %s12 = ssub.s32 1, %s10
  %s13 = scalar_select 0, %s12, %s10
  $region1: #{tpu_custom_call.1} parent=0
    #allocation2 [shape = 'u8[8192]{0}', space=vmem, size = 0x2000, scoped, tag = 'output window, operand 0, single buffered']
    #allocation3 [shape = 's32[1]{0}', space=sflag, size = 0x4, scoped, tag = 'scoped memory for tpu_custom_call.1']
    %14 = vsyncpa [#allocation3], 0
    // Predicated region
    $region2: #{tpu_custom_call.1} parent=1 // pred_check
      _
    $region3: #{tpu_custom_call.1} parent=1 // pred_check_branch
      %16 = sbr.rel (0) target = $region5
    $region4: #{tpu_custom_call.1} parent=1 // pred_region
      _
    $region5: #{tpu_custom_call.1} parent=1 // pred_fallthru
      _
    // Predicated region
    $region6: #{tpu_custom_call.1} parent=1 // pred_check
      _
    $region7: #{tpu_custom_call.1} parent=1 // pred_check_branch
      %18 = sbr.rel (0) target = $region9
    $region8: #{tpu_custom_call.1} parent=1 // pred_region
      _
    $region9: #{tpu_custom_call.1} parent=1 // pred_fallthru
      _
    // Predicated region
    $region10: #{tpu_custom_call.1} parent=1 // pred_check
      _
    $region11: #{tpu_custom_call.1} parent=1 // pred_check_branch
      %20 = sbr.rel (0) target = $region13
    $region12: #{tpu_custom_call.1} parent=1 // pred_region
      _
    $region13: #{tpu_custom_call.1} parent=1 // pred_fallthru
      _
    // Predicated region
    $region14: #{tpu_custom_call.1} parent=1 // pred_check
      _
    $region15: #{tpu_custom_call.1} parent=1 // pred_check_branch
      %22 = sbr.rel (0) target = $region17
    $region16: #{tpu_custom_call.1} parent=1 // pred_region
      _
    $region17: #{tpu_custom_call.1} parent=1 // pred_fallthru
      _
    // Predicated region
    $region18: #{tpu_custom_call.1} parent=1 // pred_check
      _
    $region19: #{tpu_custom_call.1} parent=1 // pred_check_branch
      %24 = sbr.rel (0) target = $region21
    $region20: #{tpu_custom_call.1} parent=1 // pred_region
      _
    $region21: #{tpu_custom_call.1} parent=1 // pred_fallthru
      _
    // Predicated region
    $region22: #{tpu_custom_call.1} parent=1 // pred_check
      _
    $region23: #{tpu_custom_call.1} parent=1 // pred_check_branch
      %26 = sbr.rel (0) target = $region25
    $region24: #{tpu_custom_call.1} parent=1 // pred_region
      _
    $region25: #{tpu_custom_call.1} parent=1 // pred_fallthru
      _
    // Predicated region
    $region26: #{tpu_custom_call.1} parent=1 // pred_check
      _
    $region27: #{tpu_custom_call.1} parent=1 // pred_check_branch
      %28 = sbr.rel (0) target = $region29
    $region28: #{tpu_custom_call.1} parent=1 // pred_region
      _
    $region29: #{tpu_custom_call.1} parent=1 // pred_fallthru
      _
    // Predicated region
    $region30: #{tpu_custom_call.1} parent=1 // pred_check
      _
    $region31: #{tpu_custom_call.1} parent=1 // pred_check_branch
      %30 = sbr.rel (0) target = $region33
    $region32: #{tpu_custom_call.1} parent=1 // pred_region
      _
    $region33: #{tpu_custom_call.1} parent=1 // pred_fallthru
      _
    // Predicated region
    $region34: #{tpu_custom_call.1} parent=1 // pred_check
      _
    $region35: #{tpu_custom_call.1} parent=1 // pred_check_branch
      %32 = sbr.rel (0) target = $region37
    $region36: #{tpu_custom_call.1} parent=1 // pred_region
      _
    $region37: #{tpu_custom_call.1} parent=1 // pred_fallthru
      _
    %v33 = vld [vmem:[%s2] sm:$0xff]
    %v34 = vld [vmem:[%s2 + $0x8] sm:$0xff]
    %v35 = vld [vmem:[%s2 + $0x10] sm:$0xff]
    %v36 = vld [vmem:[%s2 + $0x18] sm:$0xff]
    %v37 = vld [vmem:[%s0] sm:$0xff]
    %v38 = vld [vmem:[%s0 + $0x8] sm:$0xff]
    %v39 = vld [vmem:[%s3] sm:$0xff]
    %v40 = vld [vmem:[%s3 + $0x8] sm:$0xff]
    %v41 = vld [vmem:[%s3 + $0x10] sm:$0xff]
    %v42 = vld [vmem:[%s3 + $0x18] sm:$0xff]
    %v43 = vld [vmem:[%s1] sm:$0xf]
    %45 = vset.pattern.permute.xlu0 0
    %46 = vperm.xlu0 %45, %v39
    %v47 = vpop.permute.xlu0 %46
    %50 = vset.pattern.permute.xlu0 0
    %51 = vperm.xlu0 %50, %v40
    %v52 = vpop.permute.xlu0 %51
    %55 = vset.pattern.permute.xlu0 0
    %56 = vperm.xlu0 %55, %v41
    %v57 = vpop.permute.xlu0 %56
    %60 = vset.pattern.permute.xlu0 0
    %61 = vperm.xlu0 %60, %v42
    %v62 = vpop.permute.xlu0 %61
    %v65 = vperm.slane %v43, 0
    %v66 = vperm.slane %v43, 1
    %v67 = vperm.slane %v43, 2
    %v68 = vperm.slane %v43, 3
    %v73 = vmul.f32 %v47, %v65
    %v74 = vmul.f32 %v47, %v66
    %v75 = vmul.f32 %v47, %v67
    %v76 = vmul.f32 %v47, %v68
    %v77 = vmul.f32 %v52, %v65
    %v78 = vmul.f32 %v52, %v66
    %v79 = vmul.f32 %v52, %v67
    %v80 = vmul.f32 %v52, %v68
    %v81 = vmul.f32 %v57, %v65
    %v82 = vmul.f32 %v57, %v66
    %v83 = vmul.f32 %v57, %v67
    %v84 = vmul.f32 %v57, %v68
    %v85 = vmul.f32 %v62, %v65
    %v86 = vmul.f32 %v62, %v66
    %v87 = vmul.f32 %v62, %v67
    %v88 = vmul.f32 %v62, %v68
    %91 = vst [vmem:[#allocation1] ss:$2 sm:$0xff] %v37
    %s92 = scalar_lea.vmem [#allocation1], 16
    %93 = vst [vmem:[%s92] ss:$2 sm:$0xff] %v38
    %v94 = vld.sshfl [vmem:[#allocation1] sm:$0xff pattern:$0x75316420]
    %v95 = vld.sshfl [vmem:[#allocation1 + $0x8] sm:$0xff pattern:$0x75316420]
    %v96 = vld.sshfl [vmem:[#allocation1 + $0x10] sm:$0xff pattern:$0x75316420]
    %v97 = vld.sshfl [vmem:[#allocation1 + $0x18] sm:$0xff pattern:$0x75316420]
    %vm98 = vcmask 31744
    %v100 = vsel %vm98, %v33, 0
    %v103 = vsel %vm98, %v34, 0
    %v106 = vsel %vm98, %v35, 0
    %v109 = vsel %vm98, %v36, 0
    %vm111 = vcmask 1043456
    %v112 = vsel %vm111, %v94, 0
    %v114 = vsel %vm111, %v95, 0
    %v116 = vsel %vm111, %v96, 0
    %v118 = vsel %vm111, %v97, 0
    %120 = vmatpush.msra.mxu0 0.0
    %121 = vmatpush.msra.mxu0 0.0
    %122 = vmatpush.msra.mxu0 0.0
    %123 = vmatpush.msra.mxu0 0.0
    %124 = vmatpush.msra.mxu0 0.0
    %125 = vmatpush.msra.mxu0 0.0
    %126 = vmatpush.msra.mxu0 0.0
    %127 = vmatpush.msra.mxu0 0.0
    %128 = vmatpush.msra.mxu0 0.0
    %129 = vmatpush.msra.mxu0 0.0
    %130 = vmatpush.msra.mxu0 0.0
    %131 = vmatpush.msra.mxu0 0.0
    %132 = vmatpush.msra.mxu0 0.0
    %133 = vmatpush.msra.mxu0 0.0
    %134 = vmatpush.msra.mxu0 0.0
    %135 = vmatpush.msra.mxu0 %v112
    %136 = vmatmul.f32.gmra.mxu0 %v100
    %v137 = vpop.f32.mrf.mxu0
    %v138 = vadd.f32 %v73, %v137
    %139 = vmatmul.f32.gmra.mxu0 %v103
    %v140 = vpop.f32.mrf.mxu0
    %v141 = vadd.f32 %v77, %v140
    %142 = vmatmul.f32.gmra.mxu0 %v106
    %v143 = vpop.f32.mrf.mxu0
    %v144 = vadd.f32 %v81, %v143
    %145 = vmatmul.f32.gmra.mxu0 %v109
    %v146 = vpop.f32.mrf.mxu0
    %v147 = vadd.f32 %v85, %v146
    %148 = vdwg.mxu0
    %149 = vmatpush.msra.mxu0 0.0
    %150 = vmatpush.msra.mxu0 0.0
    %151 = vmatpush.msra.mxu0 0.0
    %152 = vmatpush.msra.mxu0 0.0
    %153 = vmatpush.msra.mxu0 0.0
    %154 = vmatpush.msra.mxu0 0.0
    %155 = vmatpush.msra.mxu0 0.0
    %156 = vmatpush.msra.mxu0 0.0
    %157 = vmatpush.msra.mxu0 0.0
    %158 = vmatpush.msra.mxu0 0.0
    %159 = vmatpush.msra.mxu0 0.0
    %160 = vmatpush.msra.mxu0 0.0
    %161 = vmatpush.msra.mxu0 0.0
    %162 = vmatpush.msra.mxu0 0.0
    %163 = vmatpush.msra.mxu0 0.0
    %164 = vmatpush.msra.mxu0 %v114
    %165 = vmatmul.f32.gmra.mxu0 %v100
    %v166 = vpop.f32.mrf.mxu0
    %v167 = vadd.f32 %v74, %v166
    %168 = vmatmul.f32.gmra.mxu0 %v103
    %v169 = vpop.f32.mrf.mxu0
    %v170 = vadd.f32 %v78, %v169
    %171 = vmatmul.f32.gmra.mxu0 %v106
    %v172 = vpop.f32.mrf.mxu0
    %v173 = vadd.f32 %v82, %v172
    %174 = vmatmul.f32.gmra.mxu0 %v109
    %v175 = vpop.f32.mrf.mxu0
    %v176 = vadd.f32 %v86, %v175
    %177 = vdwg.mxu0
    %178 = vmatpush.msra.mxu0 0.0
    %179 = vmatpush.msra.mxu0 0.0
    %180 = vmatpush.msra.mxu0 0.0
    %181 = vmatpush.msra.mxu0 0.0
    %182 = vmatpush.msra.mxu0 0.0
    %183 = vmatpush.msra.mxu0 0.0
    %184 = vmatpush.msra.mxu0 0.0
    %185 = vmatpush.msra.mxu0 0.0
    %186 = vmatpush.msra.mxu0 0.0
    %187 = vmatpush.msra.mxu0 0.0
    %188 = vmatpush.msra.mxu0 0.0
    %189 = vmatpush.msra.mxu0 0.0
    %190 = vmatpush.msra.mxu0 0.0
    %191 = vmatpush.msra.mxu0 0.0
    %192 = vmatpush.msra.mxu0 0.0
    %193 = vmatpush.msra.mxu0 %v116
    %194 = vmatmul.f32.gmra.mxu0 %v100
    %v195 = vpop.f32.mrf.mxu0
    %v196 = vadd.f32 %v75, %v195
    %197 = vmatmul.f32.gmra.mxu0 %v103
    %v198 = vpop.f32.mrf.mxu0
    %v199 = vadd.f32 %v79, %v198
    %200 = vmatmul.f32.gmra.mxu0 %v106
    %v201 = vpop.f32.mrf.mxu0
    %v202 = vadd.f32 %v83, %v201
    %203 = vmatmul.f32.gmra.mxu0 %v109
    %v204 = vpop.f32.mrf.mxu0
    %v205 = vadd.f32 %v87, %v204
    %206 = vdwg.mxu0
    %207 = vmatpush.msra.mxu0 0.0
    %208 = vmatpush.msra.mxu0 0.0
    %209 = vmatpush.msra.mxu0 0.0
    %210 = vmatpush.msra.mxu0 0.0
    %211 = vmatpush.msra.mxu0 0.0
    %212 = vmatpush.msra.mxu0 0.0
    %213 = vmatpush.msra.mxu0 0.0
    %214 = vmatpush.msra.mxu0 0.0
    %215 = vmatpush.msra.mxu0 0.0
    %216 = vmatpush.msra.mxu0 0.0
    %217 = vmatpush.msra.mxu0 0.0
    %218 = vmatpush.msra.mxu0 0.0
    %219 = vmatpush.msra.mxu0 0.0
    %220 = vmatpush.msra.mxu0 0.0
    %221 = vmatpush.msra.mxu0 0.0
    %222 = vmatpush.msra.mxu0 %v118
    %223 = vmatmul.f32.gmra.mxu0 %v100
    %v224 = vpop.f32.mrf.mxu0
    %v225 = vadd.f32 %v76, %v224
    %226 = vmatmul.f32.gmra.mxu0 %v103
    %v227 = vpop.f32.mrf.mxu0
    %v228 = vadd.f32 %v80, %v227
    %229 = vmatmul.f32.gmra.mxu0 %v106
    %v230 = vpop.f32.mrf.mxu0
    %v231 = vadd.f32 %v84, %v230
    %232 = vmatmul.f32.gmra.mxu0 %v109
    %v233 = vpop.f32.mrf.mxu0
    %v234 = vadd.f32 %v88, %v233
    %235 = vdwg.mxu0
    %v236 = vld [vmem:[%s4] sm:$0xff]
    %v237 = vld [vmem:[%s4 + $0x8] sm:$0xff]
    %v238 = vld [vmem:[%s4 + $0x10] sm:$0xff]
    %v239 = vld [vmem:[%s4 + $0x18] sm:$0xff]
    %241 = vset.pattern.permute.xlu0 0
    %242 = vperm.xlu0 %241, %v236
    %v243 = vpop.permute.xlu0 %242
    %246 = vset.pattern.permute.xlu0 0
    %247 = vperm.xlu0 %246, %v237
    %v248 = vpop.permute.xlu0 %247
    %251 = vset.pattern.permute.xlu0 0
    %252 = vperm.xlu0 %251, %v238
    %v253 = vpop.permute.xlu0 %252
    %256 = vset.pattern.permute.xlu0 0
    %257 = vperm.xlu0 %256, %v239
    %v258 = vpop.permute.xlu0 %257
    %v260 = vadd.f32 %v138, %v243
    %v261 = vadd.f32 %v167, %v243
    %v262 = vadd.f32 %v196, %v243
    %v263 = vadd.f32 %v225, %v243
    %v264 = vadd.f32 %v141, %v248
    %v265 = vadd.f32 %v170, %v248
    %v266 = vadd.f32 %v199, %v248
    %v267 = vadd.f32 %v228, %v248
    %v268 = vadd.f32 %v144, %v253
    %v269 = vadd.f32 %v173, %v253
    %v270 = vadd.f32 %v202, %v253
    %v271 = vadd.f32 %v231, %v253
    %v272 = vadd.f32 %v147, %v258
    %v273 = vadd.f32 %v176, %v258
    %v274 = vadd.f32 %v205, %v258
    %v275 = vadd.f32 %v234, %v258
    %v276 = vmin.f32 %v260, 20.0
    %v277 = vmin.f32 %v261, 20.0
    %v278 = vmin.f32 %v262, 20.0
    %v279 = vmin.f32 %v263, 20.0
    %v280 = vmin.f32 %v264, 20.0
    %v281 = vmin.f32 %v265, 20.0
    %v282 = vmin.f32 %v266, 20.0
    %v283 = vmin.f32 %v267, 20.0
    %v284 = vmin.f32 %v268, 20.0
    %v285 = vmin.f32 %v269, 20.0
    %v286 = vmin.f32 %v270, 20.0
    %v287 = vmin.f32 %v271, 20.0
    %v288 = vmin.f32 %v272, 20.0
    %v289 = vmin.f32 %v273, 20.0
    %v290 = vmin.f32 %v274, 20.0
    %v291 = vmin.f32 %v275, 20.0
    %vm292 = vcmp.gt.f32.partialorder %v260, 20.0
    %vm293 = vcmp.gt.f32.partialorder %v261, 20.0
    %vm294 = vcmp.gt.f32.partialorder %v262, 20.0
    %vm295 = vcmp.gt.f32.partialorder %v263, 20.0
    %vm296 = vcmp.gt.f32.partialorder %v264, 20.0
    %vm297 = vcmp.gt.f32.partialorder %v265, 20.0
    %vm298 = vcmp.gt.f32.partialorder %v266, 20.0
    %vm299 = vcmp.gt.f32.partialorder %v267, 20.0
    %vm300 = vcmp.gt.f32.partialorder %v268, 20.0
    %vm301 = vcmp.gt.f32.partialorder %v269, 20.0
    %vm302 = vcmp.gt.f32.partialorder %v270, 20.0
    %vm303 = vcmp.gt.f32.partialorder %v271, 20.0
    %vm304 = vcmp.gt.f32.partialorder %v272, 20.0
    %vm305 = vcmp.gt.f32.partialorder %v273, 20.0
    %vm306 = vcmp.gt.f32.partialorder %v274, 20.0
    %vm307 = vcmp.gt.f32.partialorder %v275, 20.0
    %v308 = vmul.f32 %v276, 1.442695
    %v309 = vpow.pop %v308
    %v310 = vmul.f32 %v277, 1.442695
    %v311 = vpow.pop %v310
    %v312 = vmul.f32 %v278, 1.442695
    %v313 = vpow.pop %v312
    %v314 = vmul.f32 %v279, 1.442695
    %v315 = vpow.pop %v314
    %v316 = vmul.f32 %v280, 1.442695
    %v317 = vpow.pop %v316
    %v318 = vmul.f32 %v281, 1.442695
    %v319 = vpow.pop %v318
    %v320 = vmul.f32 %v282, 1.442695
    %v321 = vpow.pop %v320
    %v322 = vmul.f32 %v283, 1.442695
    %v323 = vpow.pop %v322
    %v324 = vmul.f32 %v284, 1.442695
    %v325 = vpow.pop %v324
    %v326 = vmul.f32 %v285, 1.442695
    %v327 = vpow.pop %v326
    %v328 = vmul.f32 %v286, 1.442695
    %v329 = vpow.pop %v328
    %v330 = vmul.f32 %v287, 1.442695
    %v331 = vpow.pop %v330
    %v332 = vmul.f32 %v288, 1.442695
    %v333 = vpow.pop %v332
    %v334 = vmul.f32 %v289, 1.442695
    %v335 = vpow.pop %v334
    %v336 = vmul.f32 %v290, 1.442695
    %v337 = vpow.pop %v336
    %v338 = vmul.f32 %v291, 1.442695
    %v339 = vpow.pop %v338
    %v340 = vadd.f32 %v309, 1.0
    %v341 = vlog2.pop %v340
    %v342 = vmul.f32 %v341, 0.6931472
    %v343 = vmul.f32 -0.5, %v309
    %v344 = vadd.f32 %v343, 1.0
    %v345 = vmul.f32 %v344, %v309
    %v346 = vand.u32 2147483647, %v309
    %vm347 = vcmp.lt.f32.partialorder %v346, 0.0004427343
    %v348 = vsel %vm347, %v345, %v342
    %v349 = vadd.f32 %v311, 1.0
    %v350 = vlog2.pop %v349
    %v351 = vmul.f32 %v350, 0.6931472
    %v352 = vmul.f32 -0.5, %v311
    %v353 = vadd.f32 %v352, 1.0
    %v354 = vmul.f32 %v353, %v311
    %v355 = vand.u32 2147483647, %v311
    %vm356 = vcmp.lt.f32.partialorder %v355, 0.0004427343
    %v357 = vsel %vm356, %v354, %v351
    %v358 = vadd.f32 %v313, 1.0
    %v359 = vlog2.pop %v358
    %v360 = vmul.f32 %v359, 0.6931472
    %v361 = vmul.f32 -0.5, %v313
    %v362 = vadd.f32 %v361, 1.0
    %v363 = vmul.f32 %v362, %v313
    %v364 = vand.u32 2147483647, %v313
    %vm365 = vcmp.lt.f32.partialorder %v364, 0.0004427343
    %v366 = vsel %vm365, %v363, %v360
    %v367 = vadd.f32 %v315, 1.0
    %v368 = vlog2.pop %v367
    %v369 = vmul.f32 %v368, 0.6931472
    %v370 = vmul.f32 -0.5, %v315
    %v371 = vadd.f32 %v370, 1.0
    %v372 = vmul.f32 %v371, %v315
    %v373 = vand.u32 2147483647, %v315
    %vm374 = vcmp.lt.f32.partialorder %v373, 0.0004427343
    %v375 = vsel %vm374, %v372, %v369
    %v376 = vadd.f32 %v317, 1.0
    %v377 = vlog2.pop %v376
    %v378 = vmul.f32 %v377, 0.6931472
    %v379 = vmul.f32 -0.5, %v317
    %v380 = vadd.f32 %v379, 1.0
    %v381 = vmul.f32 %v380, %v317
    %v382 = vand.u32 2147483647, %v317
    %vm383 = vcmp.lt.f32.partialorder %v382, 0.0004427343
    %v384 = vsel %vm383, %v381, %v378
    %v385 = vadd.f32 %v319, 1.0
    %v386 = vlog2.pop %v385
    %v387 = vmul.f32 %v386, 0.6931472
    %v388 = vmul.f32 -0.5, %v319
    %v389 = vadd.f32 %v388, 1.0
    %v390 = vmul.f32 %v389, %v319
    %v391 = vand.u32 2147483647, %v319
    %vm392 = vcmp.lt.f32.partialorder %v391, 0.0004427343
    %v393 = vsel %vm392, %v390, %v387
    %v394 = vadd.f32 %v321, 1.0
    %v395 = vlog2.pop %v394
    %v396 = vmul.f32 %v395, 0.6931472
    %v397 = vmul.f32 -0.5, %v321
    %v398 = vadd.f32 %v397, 1.0
    %v399 = vmul.f32 %v398, %v321
    %v400 = vand.u32 2147483647, %v321
    %vm401 = vcmp.lt.f32.partialorder %v400, 0.0004427343
    %v402 = vsel %vm401, %v399, %v396
    %v403 = vadd.f32 %v323, 1.0
    %v404 = vlog2.pop %v403
    %v405 = vmul.f32 %v404, 0.6931472
    %v406 = vmul.f32 -0.5, %v323
    %v407 = vadd.f32 %v406, 1.0
    %v408 = vmul.f32 %v407, %v323
    %v409 = vand.u32 2147483647, %v323
    %vm410 = vcmp.lt.f32.partialorder %v409, 0.0004427343
    %v411 = vsel %vm410, %v408, %v405
    %v412 = vadd.f32 %v325, 1.0
    %v413 = vlog2.pop %v412
    %v414 = vmul.f32 %v413, 0.6931472
    %v415 = vmul.f32 -0.5, %v325
    %v416 = vadd.f32 %v415, 1.0
    %v417 = vmul.f32 %v416, %v325
    %v418 = vand.u32 2147483647, %v325
    %vm419 = vcmp.lt.f32.partialorder %v418, 0.0004427343
    %v420 = vsel %vm419, %v417, %v414
    %v421 = vadd.f32 %v327, 1.0
    %v422 = vlog2.pop %v421
    %v423 = vmul.f32 %v422, 0.6931472
    %v424 = vmul.f32 -0.5, %v327
    %v425 = vadd.f32 %v424, 1.0
    %v426 = vmul.f32 %v425, %v327
    %v427 = vand.u32 2147483647, %v327
    %vm428 = vcmp.lt.f32.partialorder %v427, 0.0004427343
    %v429 = vsel %vm428, %v426, %v423
    %v430 = vadd.f32 %v329, 1.0
    %v431 = vlog2.pop %v430
    %v432 = vmul.f32 %v431, 0.6931472
    %v433 = vmul.f32 -0.5, %v329
    %v434 = vadd.f32 %v433, 1.0
    %v435 = vmul.f32 %v434, %v329
    %v436 = vand.u32 2147483647, %v329
    %vm437 = vcmp.lt.f32.partialorder %v436, 0.0004427343
    %v438 = vsel %vm437, %v435, %v432
    %v439 = vadd.f32 %v331, 1.0
    %v440 = vlog2.pop %v439
    %v441 = vmul.f32 %v440, 0.6931472
    %v442 = vmul.f32 -0.5, %v331
    %v443 = vadd.f32 %v442, 1.0
    %v444 = vmul.f32 %v443, %v331
    %v445 = vand.u32 2147483647, %v331
    %vm446 = vcmp.lt.f32.partialorder %v445, 0.0004427343
    %v447 = vsel %vm446, %v444, %v441
    %v448 = vadd.f32 %v333, 1.0
    %v449 = vlog2.pop %v448
    %v450 = vmul.f32 %v449, 0.6931472
    %v451 = vmul.f32 -0.5, %v333
    %v452 = vadd.f32 %v451, 1.0
    %v453 = vmul.f32 %v452, %v333
    %v454 = vand.u32 2147483647, %v333
    %vm455 = vcmp.lt.f32.partialorder %v454, 0.0004427343
    %v456 = vsel %vm455, %v453, %v450
    %v457 = vadd.f32 %v335, 1.0
    %v458 = vlog2.pop %v457
    %v459 = vmul.f32 %v458, 0.6931472
    %v460 = vmul.f32 -0.5, %v335
    %v461 = vadd.f32 %v460, 1.0
    %v462 = vmul.f32 %v461, %v335
    %v463 = vand.u32 2147483647, %v335
    %vm464 = vcmp.lt.f32.partialorder %v463, 0.0004427343
    %v465 = vsel %vm464, %v462, %v459
    %v466 = vadd.f32 %v337, 1.0
    %v467 = vlog2.pop %v466
    %v468 = vmul.f32 %v467, 0.6931472
    %v469 = vmul.f32 -0.5, %v337
    %v470 = vadd.f32 %v469, 1.0
    %v471 = vmul.f32 %v470, %v337
    %v472 = vand.u32 2147483647, %v337
    %vm473 = vcmp.lt.f32.partialorder %v472, 0.0004427343
    %v474 = vsel %vm473, %v471, %v468
    %v475 = vadd.f32 %v339, 1.0
    %v476 = vlog2.pop %v475
    %v477 = vmul.f32 %v476, 0.6931472
    %v478 = vmul.f32 -0.5, %v339
    %v479 = vadd.f32 %v478, 1.0
    %v480 = vmul.f32 %v479, %v339
    %v481 = vand.u32 2147483647, %v339
    %vm482 = vcmp.lt.f32.partialorder %v481, 0.0004427343
    %v483 = vsel %vm482, %v480, %v477
    %v484 = vsel %vm292, %v260, %v348
    %v485 = vsel %vm293, %v261, %v357
    %v486 = vsel %vm294, %v262, %v366
    %v487 = vsel %vm295, %v263, %v375
    %v488 = vsel %vm296, %v264, %v384
    %v489 = vsel %vm297, %v265, %v393
    %v490 = vsel %vm298, %v266, %v402
    %v491 = vsel %vm299, %v267, %v411
    %v492 = vsel %vm300, %v268, %v420
    %v493 = vsel %vm301, %v269, %v429
    %v494 = vsel %vm302, %v270, %v438
    %v495 = vsel %vm303, %v271, %v447
    %v496 = vsel %vm304, %v272, %v456
    %v497 = vsel %vm305, %v273, %v465
    %v498 = vsel %vm306, %v274, %v474
    %v499 = vsel %vm307, %v275, %v483
    %v500 = vld [vmem:[%s5] sm:$0xff]
    %v501 = vld [vmem:[%s5 + $0x8] sm:$0xff]
    %v502 = vld [vmem:[%s5 + $0x10] sm:$0xff]
    %v503 = vld [vmem:[%s5 + $0x18] sm:$0xff]
    %v504 = vld [vmem:[%s6] sm:$0xff]
    %v505 = vld [vmem:[%s6 + $0x8] sm:$0xff]
    %v506 = vld [vmem:[%s6 + $0x10] sm:$0xff]
    %v507 = vld [vmem:[%s6 + $0x18] sm:$0xff]
    %509 = vset.pattern.permute.xlu0 0
    %510 = vperm.xlu0 %509, %v504
    %v511 = vpop.permute.xlu0 %510
    %514 = vset.pattern.permute.xlu0 0
    %515 = vperm.xlu0 %514, %v505
    %v516 = vpop.permute.xlu0 %515
    %519 = vset.pattern.permute.xlu0 0
    %520 = vperm.xlu0 %519, %v506
    %v521 = vpop.permute.xlu0 %520
    %524 = vset.pattern.permute.xlu0 0
    %525 = vperm.xlu0 %524, %v507
    %v526 = vpop.permute.xlu0 %525
    %vm528 = vcmask 261120
    %v530 = vsel %vm528, %v500, 0
    %v533 = vsel %vm528, %v501, 0
    %v536 = vsel %vm528, %v502, 0
    %v539 = vsel %vm528, %v503, 0
    %541 = vmatpush.msra.mxu0 0.0
    %542 = vmatpush.msra.mxu0 0.0
    %543 = vmatpush.msra.mxu0 0.0
    %544 = vmatpush.msra.mxu0 0.0
    %545 = vmatpush.msra.mxu0 0.0
    %546 = vmatpush.msra.mxu0 0.0
    %547 = vmatpush.msra.mxu0 0.0
    %548 = vmatpush.msra.mxu0 0.0
    %549 = vmatpush.msra.mxu0 0.0
    %550 = vmatpush.msra.mxu0 0.0
    %551 = vmatpush.msra.mxu0 0.0
    %552 = vmatpush.msra.mxu0 0.0
    %553 = vmatpush.msra.mxu0 %v496
    %554 = vmatpush.msra.mxu0 %v492
    %555 = vmatpush.msra.mxu0 %v488
    %556 = vmatpush.msra.mxu0 %v484
    %557 = vmatmul.f32.gmra.mxu0 %v530
    %v558 = vpop.f32.mrf.mxu0
    %v559 = vadd.f32 %v511, %v558
    %560 = vmatmul.f32.gmra.mxu0 %v533
    %v561 = vpop.f32.mrf.mxu0
    %v562 = vadd.f32 %v516, %v561
    %563 = vmatmul.f32.gmra.mxu0 %v536
    %v564 = vpop.f32.mrf.mxu0
    %v565 = vadd.f32 %v521, %v564
    %566 = vmatmul.f32.gmra.mxu0 %v539
    %v567 = vpop.f32.mrf.mxu0
    %v568 = vadd.f32 %v526, %v567
    %569 = vdwg.mxu0
    %570 = vmatpush.msra.mxu0 0.0
    %571 = vmatpush.msra.mxu0 0.0
    %572 = vmatpush.msra.mxu0 0.0
    %573 = vmatpush.msra.mxu0 0.0
    %574 = vmatpush.msra.mxu0 0.0
    %575 = vmatpush.msra.mxu0 0.0
    %576 = vmatpush.msra.mxu0 0.0
    %577 = vmatpush.msra.mxu0 0.0
    %578 = vmatpush.msra.mxu0 0.0
    %579 = vmatpush.msra.mxu0 0.0
    %580 = vmatpush.msra.mxu0 0.0
    %581 = vmatpush.msra.mxu0 0.0
    %582 = vmatpush.msra.mxu0 %v497
    %583 = vmatpush.msra.mxu0 %v493
    %584 = vmatpush.msra.mxu0 %v489
    %585 = vmatpush.msra.mxu0 %v485
    %586 = vmatmul.f32.gmra.mxu0 %v530
    %v587 = vpop.f32.mrf.mxu0
    %v588 = vadd.f32 %v511, %v587
    %589 = vmatmul.f32.gmra.mxu0 %v533
    %v590 = vpop.f32.mrf.mxu0
    %v591 = vadd.f32 %v516, %v590
    %592 = vmatmul.f32.gmra.mxu0 %v536
    %v593 = vpop.f32.mrf.mxu0
    %v594 = vadd.f32 %v521, %v593
    %595 = vmatmul.f32.gmra.mxu0 %v539
    %v596 = vpop.f32.mrf.mxu0
    %v597 = vadd.f32 %v526, %v596
    %598 = vdwg.mxu0
    %599 = vmatpush.msra.mxu0 0.0
    %600 = vmatpush.msra.mxu0 0.0
    %601 = vmatpush.msra.mxu0 0.0
    %602 = vmatpush.msra.mxu0 0.0
    %603 = vmatpush.msra.mxu0 0.0
    %604 = vmatpush.msra.mxu0 0.0
    %605 = vmatpush.msra.mxu0 0.0
    %606 = vmatpush.msra.mxu0 0.0
    %607 = vmatpush.msra.mxu0 0.0
    %608 = vmatpush.msra.mxu0 0.0
    %609 = vmatpush.msra.mxu0 0.0
    %610 = vmatpush.msra.mxu0 0.0
    %611 = vmatpush.msra.mxu0 %v498
    %612 = vmatpush.msra.mxu0 %v494
    %613 = vmatpush.msra.mxu0 %v490
    %614 = vmatpush.msra.mxu0 %v486
    %615 = vmatmul.f32.gmra.mxu0 %v530
    %v616 = vpop.f32.mrf.mxu0
    %v617 = vadd.f32 %v511, %v616
    %618 = vmatmul.f32.gmra.mxu0 %v533
    %v619 = vpop.f32.mrf.mxu0
    %v620 = vadd.f32 %v516, %v619
    %621 = vmatmul.f32.gmra.mxu0 %v536
    %v622 = vpop.f32.mrf.mxu0
    %v623 = vadd.f32 %v521, %v622
    %624 = vmatmul.f32.gmra.mxu0 %v539
    %v625 = vpop.f32.mrf.mxu0
    %v626 = vadd.f32 %v526, %v625
    %627 = vdwg.mxu0
    %628 = vmatpush.msra.mxu0 0.0
    %629 = vmatpush.msra.mxu0 0.0
    %630 = vmatpush.msra.mxu0 0.0
    %631 = vmatpush.msra.mxu0 0.0
    %632 = vmatpush.msra.mxu0 0.0
    %633 = vmatpush.msra.mxu0 0.0
    %634 = vmatpush.msra.mxu0 0.0
    %635 = vmatpush.msra.mxu0 0.0
    %636 = vmatpush.msra.mxu0 0.0
    %637 = vmatpush.msra.mxu0 0.0
    %638 = vmatpush.msra.mxu0 0.0
    %639 = vmatpush.msra.mxu0 0.0
    %640 = vmatpush.msra.mxu0 %v499
    %641 = vmatpush.msra.mxu0 %v495
    %642 = vmatpush.msra.mxu0 %v491
    %643 = vmatpush.msra.mxu0 %v487
    %644 = vmatmul.f32.gmra.mxu0 %v530
    %v645 = vpop.f32.mrf.mxu0
    %v646 = vadd.f32 %v511, %v645
    %647 = vmatmul.f32.gmra.mxu0 %v533
    %v648 = vpop.f32.mrf.mxu0
    %v649 = vadd.f32 %v516, %v648
    %650 = vmatmul.f32.gmra.mxu0 %v536
    %v651 = vpop.f32.mrf.mxu0
    %v652 = vadd.f32 %v521, %v651
    %653 = vmatmul.f32.gmra.mxu0 %v539
    %v654 = vpop.f32.mrf.mxu0
    %v655 = vadd.f32 %v526, %v654
    %656 = vdwg.mxu0
    %v657 = vmin.f32 %v559, 20.0
    %v658 = vmin.f32 %v588, 20.0
    %v659 = vmin.f32 %v617, 20.0
    %v660 = vmin.f32 %v646, 20.0
    %v661 = vmin.f32 %v562, 20.0
    %v662 = vmin.f32 %v591, 20.0
    %v663 = vmin.f32 %v620, 20.0
    %v664 = vmin.f32 %v649, 20.0
    %v665 = vmin.f32 %v565, 20.0
    %v666 = vmin.f32 %v594, 20.0
    %v667 = vmin.f32 %v623, 20.0
    %v668 = vmin.f32 %v652, 20.0
    %v669 = vmin.f32 %v568, 20.0
    %v670 = vmin.f32 %v597, 20.0
    %v671 = vmin.f32 %v626, 20.0
    %v672 = vmin.f32 %v655, 20.0
    %vm673 = vcmp.gt.f32.partialorder %v559, 20.0
    %vm674 = vcmp.gt.f32.partialorder %v588, 20.0
    %vm675 = vcmp.gt.f32.partialorder %v617, 20.0
    %vm676 = vcmp.gt.f32.partialorder %v646, 20.0
    %vm677 = vcmp.gt.f32.partialorder %v562, 20.0
    %vm678 = vcmp.gt.f32.partialorder %v591, 20.0
    %vm679 = vcmp.gt.f32.partialorder %v620, 20.0
    %vm680 = vcmp.gt.f32.partialorder %v649, 20.0
    %vm681 = vcmp.gt.f32.partialorder %v565, 20.0
    %vm682 = vcmp.gt.f32.partialorder %v594, 20.0
    %vm683 = vcmp.gt.f32.partialorder %v623, 20.0
    %vm684 = vcmp.gt.f32.partialorder %v652, 20.0
    %vm685 = vcmp.gt.f32.partialorder %v568, 20.0
    %vm686 = vcmp.gt.f32.partialorder %v597, 20.0
    %vm687 = vcmp.gt.f32.partialorder %v626, 20.0
    %vm688 = vcmp.gt.f32.partialorder %v655, 20.0
    %v689 = vmul.f32 %v657, 1.442695
    %v690 = vpow.pop %v689
    %v691 = vmul.f32 %v658, 1.442695
    %v692 = vpow.pop %v691
    %v693 = vmul.f32 %v659, 1.442695
    %v694 = vpow.pop %v693
    %v695 = vmul.f32 %v660, 1.442695
    %v696 = vpow.pop %v695
    %v697 = vmul.f32 %v661, 1.442695
    %v698 = vpow.pop %v697
    %v699 = vmul.f32 %v662, 1.442695
    %v700 = vpow.pop %v699
    %v701 = vmul.f32 %v663, 1.442695
    %v702 = vpow.pop %v701
    %v703 = vmul.f32 %v664, 1.442695
    %v704 = vpow.pop %v703
    %v705 = vmul.f32 %v665, 1.442695
    %v706 = vpow.pop %v705
    %v707 = vmul.f32 %v666, 1.442695
    %v708 = vpow.pop %v707
    %v709 = vmul.f32 %v667, 1.442695
    %v710 = vpow.pop %v709
    %v711 = vmul.f32 %v668, 1.442695
    %v712 = vpow.pop %v711
    %v713 = vmul.f32 %v669, 1.442695
    %v714 = vpow.pop %v713
    %v715 = vmul.f32 %v670, 1.442695
    %v716 = vpow.pop %v715
    %v717 = vmul.f32 %v671, 1.442695
    %v718 = vpow.pop %v717
    %v719 = vmul.f32 %v672, 1.442695
    %v720 = vpow.pop %v719
    %v721 = vadd.f32 %v690, 1.0
    %v722 = vlog2.pop %v721
    %v723 = vmul.f32 %v722, 0.6931472
    %v724 = vmul.f32 -0.5, %v690
    %v725 = vadd.f32 %v724, 1.0
    %v726 = vmul.f32 %v725, %v690
    %v727 = vand.u32 2147483647, %v690
    %vm728 = vcmp.lt.f32.partialorder %v727, 0.0004427343
    %v729 = vsel %vm728, %v726, %v723
    %v730 = vadd.f32 %v692, 1.0
    %v731 = vlog2.pop %v730
    %v732 = vmul.f32 %v731, 0.6931472
    %v733 = vmul.f32 -0.5, %v692
    %v734 = vadd.f32 %v733, 1.0
    %v735 = vmul.f32 %v734, %v692
    %v736 = vand.u32 2147483647, %v692
    %vm737 = vcmp.lt.f32.partialorder %v736, 0.0004427343
    %v738 = vsel %vm737, %v735, %v732
    %v739 = vadd.f32 %v694, 1.0
    %v740 = vlog2.pop %v739
    %v741 = vmul.f32 %v740, 0.6931472
    %v742 = vmul.f32 -0.5, %v694
    %v743 = vadd.f32 %v742, 1.0
    %v744 = vmul.f32 %v743, %v694
    %v745 = vand.u32 2147483647, %v694
    %vm746 = vcmp.lt.f32.partialorder %v745, 0.0004427343
    %v747 = vsel %vm746, %v744, %v741
    %v748 = vadd.f32 %v696, 1.0
    %v749 = vlog2.pop %v748
    %v750 = vmul.f32 %v749, 0.6931472
    %v751 = vmul.f32 -0.5, %v696
    %v752 = vadd.f32 %v751, 1.0
    %v753 = vmul.f32 %v752, %v696
    %v754 = vand.u32 2147483647, %v696
    %vm755 = vcmp.lt.f32.partialorder %v754, 0.0004427343
    %v756 = vsel %vm755, %v753, %v750
    %v757 = vadd.f32 %v698, 1.0
    %v758 = vlog2.pop %v757
    %v759 = vmul.f32 %v758, 0.6931472
    %v760 = vmul.f32 -0.5, %v698
    %v761 = vadd.f32 %v760, 1.0
    %v762 = vmul.f32 %v761, %v698
    %v763 = vand.u32 2147483647, %v698
    %vm764 = vcmp.lt.f32.partialorder %v763, 0.0004427343
    %v765 = vsel %vm764, %v762, %v759
    %v766 = vadd.f32 %v700, 1.0
    %v767 = vlog2.pop %v766
    %v768 = vmul.f32 %v767, 0.6931472
    %v769 = vmul.f32 -0.5, %v700
    %v770 = vadd.f32 %v769, 1.0
    %v771 = vmul.f32 %v770, %v700
    %v772 = vand.u32 2147483647, %v700
    %vm773 = vcmp.lt.f32.partialorder %v772, 0.0004427343
    %v774 = vsel %vm773, %v771, %v768
    %v775 = vadd.f32 %v702, 1.0
    %v776 = vlog2.pop %v775
    %v777 = vmul.f32 %v776, 0.6931472
    %v778 = vmul.f32 -0.5, %v702
    %v779 = vadd.f32 %v778, 1.0
    %v780 = vmul.f32 %v779, %v702
    %v781 = vand.u32 2147483647, %v702
    %vm782 = vcmp.lt.f32.partialorder %v781, 0.0004427343
    %v783 = vsel %vm782, %v780, %v777
    %v784 = vadd.f32 %v704, 1.0
    %v785 = vlog2.pop %v784
    %v786 = vmul.f32 %v785, 0.6931472
    %v787 = vmul.f32 -0.5, %v704
    %v788 = vadd.f32 %v787, 1.0
    %v789 = vmul.f32 %v788, %v704
    %v790 = vand.u32 2147483647, %v704
    %vm791 = vcmp.lt.f32.partialorder %v790, 0.0004427343
    %v792 = vsel %vm791, %v789, %v786
    %v793 = vadd.f32 %v706, 1.0
    %v794 = vlog2.pop %v793
    %v795 = vmul.f32 %v794, 0.6931472
    %v796 = vmul.f32 -0.5, %v706
    %v797 = vadd.f32 %v796, 1.0
    %v798 = vmul.f32 %v797, %v706
    %v799 = vand.u32 2147483647, %v706
    %vm800 = vcmp.lt.f32.partialorder %v799, 0.0004427343
    %v801 = vsel %vm800, %v798, %v795
    %v802 = vadd.f32 %v708, 1.0
    %v803 = vlog2.pop %v802
    %v804 = vmul.f32 %v803, 0.6931472
    %v805 = vmul.f32 -0.5, %v708
    %v806 = vadd.f32 %v805, 1.0
    %v807 = vmul.f32 %v806, %v708
    %v808 = vand.u32 2147483647, %v708
    %vm809 = vcmp.lt.f32.partialorder %v808, 0.0004427343
    %v810 = vsel %vm809, %v807, %v804
    %v811 = vadd.f32 %v710, 1.0
    %v812 = vlog2.pop %v811
    %v813 = vmul.f32 %v812, 0.6931472
    %v814 = vmul.f32 -0.5, %v710
    %v815 = vadd.f32 %v814, 1.0
    %v816 = vmul.f32 %v815, %v710
    %v817 = vand.u32 2147483647, %v710
    %vm818 = vcmp.lt.f32.partialorder %v817, 0.0004427343
    %v819 = vsel %vm818, %v816, %v813
    %v820 = vadd.f32 %v712, 1.0
    %v821 = vlog2.pop %v820
    %v822 = vmul.f32 %v821, 0.6931472
    %v823 = vmul.f32 -0.5, %v712
    %v824 = vadd.f32 %v823, 1.0
    %v825 = vmul.f32 %v824, %v712
    %v826 = vand.u32 2147483647, %v712
    %vm827 = vcmp.lt.f32.partialorder %v826, 0.0004427343
    %v828 = vsel %vm827, %v825, %v822
    %v829 = vadd.f32 %v714, 1.0
    %v830 = vlog2.pop %v829
    %v831 = vmul.f32 %v830, 0.6931472
    %v832 = vmul.f32 -0.5, %v714
    %v833 = vadd.f32 %v832, 1.0
    %v834 = vmul.f32 %v833, %v714
    %v835 = vand.u32 2147483647, %v714
    %vm836 = vcmp.lt.f32.partialorder %v835, 0.0004427343
    %v837 = vsel %vm836, %v834, %v831
    %v838 = vadd.f32 %v716, 1.0
    %v839 = vlog2.pop %v838
    %v840 = vmul.f32 %v839, 0.6931472
    %v841 = vmul.f32 -0.5, %v716
    %v842 = vadd.f32 %v841, 1.0
    %v843 = vmul.f32 %v842, %v716
    %v844 = vand.u32 2147483647, %v716
    %vm845 = vcmp.lt.f32.partialorder %v844, 0.0004427343
    %v846 = vsel %vm845, %v843, %v840
    %v847 = vadd.f32 %v718, 1.0
    %v848 = vlog2.pop %v847
    %v849 = vmul.f32 %v848, 0.6931472
    %v850 = vmul.f32 -0.5, %v718
    %v851 = vadd.f32 %v850, 1.0
    %v852 = vmul.f32 %v851, %v718
    %v853 = vand.u32 2147483647, %v718
    %vm854 = vcmp.lt.f32.partialorder %v853, 0.0004427343
    %v855 = vsel %vm854, %v852, %v849
    %v856 = vadd.f32 %v720, 1.0
    %v857 = vlog2.pop %v856
    %v858 = vmul.f32 %v857, 0.6931472
    %v859 = vmul.f32 -0.5, %v720
    %v860 = vadd.f32 %v859, 1.0
    %v861 = vmul.f32 %v860, %v720
    %v862 = vand.u32 2147483647, %v720
    %vm863 = vcmp.lt.f32.partialorder %v862, 0.0004427343
    %v864 = vsel %vm863, %v861, %v858
    %v865 = vsel %vm673, %v559, %v729
    %v866 = vsel %vm674, %v588, %v738
    %v867 = vsel %vm675, %v617, %v747
    %v868 = vsel %vm676, %v646, %v756
    %v869 = vsel %vm677, %v562, %v765
    %v870 = vsel %vm678, %v591, %v774
    %v871 = vsel %vm679, %v620, %v783
    %v872 = vsel %vm680, %v649, %v792
    %v873 = vsel %vm681, %v565, %v801
    %v874 = vsel %vm682, %v594, %v810
    %v875 = vsel %vm683, %v623, %v819
    %v876 = vsel %vm684, %v652, %v828
    %v877 = vsel %vm685, %v568, %v837
    %v878 = vsel %vm686, %v597, %v846
    %v879 = vsel %vm687, %v626, %v855
    %v880 = vsel %vm688, %v655, %v864
    %v881 = vld [vmem:[%s7] sm:$0xf]
    %v882 = vld [vmem:[%s8] sm:$0xf]
    %884 = vset.pattern.permute.xlu0 0
    %885 = vperm.xlu0 %884, %v882
    %v886 = vpop.permute.xlu0 %885
    %v889 = vsel %vm528, %v881, 0
    %891 = vmatpush.msra.mxu0 0.0
    %892 = vmatpush.msra.mxu0 0.0
    %893 = vmatpush.msra.mxu0 0.0
    %894 = vmatpush.msra.mxu0 0.0
    %895 = vmatpush.msra.mxu0 0.0
    %896 = vmatpush.msra.mxu0 0.0
    %897 = vmatpush.msra.mxu0 0.0
    %898 = vmatpush.msra.mxu0 0.0
    %899 = vmatpush.msra.mxu0 0.0
    %900 = vmatpush.msra.mxu0 0.0
    %901 = vmatpush.msra.mxu0 0.0
    %902 = vmatpush.msra.mxu0 0.0
    %903 = vmatpush.msra.mxu0 %v877
    %904 = vmatpush.msra.mxu0 %v873
    %905 = vmatpush.msra.mxu0 %v869
    %906 = vmatpush.msra.mxu0 %v865
    %907 = vmatmul.f32.gmra.mxu0 %v889
    %v908 = vpop.f32.mrf.mxu0
    %v909 = vadd.f32 %v886, %v908
    %910 = vdwg.mxu0
    %911 = vmatpush.msra.mxu0 0.0
    %912 = vmatpush.msra.mxu0 0.0
    %913 = vmatpush.msra.mxu0 0.0
    %914 = vmatpush.msra.mxu0 0.0
    %915 = vmatpush.msra.mxu0 0.0
    %916 = vmatpush.msra.mxu0 0.0
    %917 = vmatpush.msra.mxu0 0.0
    %918 = vmatpush.msra.mxu0 0.0
    %919 = vmatpush.msra.mxu0 0.0
    %920 = vmatpush.msra.mxu0 0.0
    %921 = vmatpush.msra.mxu0 0.0
    %922 = vmatpush.msra.mxu0 0.0
    %923 = vmatpush.msra.mxu0 %v878
    %924 = vmatpush.msra.mxu0 %v874
    %925 = vmatpush.msra.mxu0 %v870
    %926 = vmatpush.msra.mxu0 %v866
    %927 = vmatmul.f32.gmra.mxu0 %v889
    %v928 = vpop.f32.mrf.mxu0
    %v929 = vadd.f32 %v886, %v928
    %930 = vdwg.mxu0
    %931 = vmatpush.msra.mxu0 0.0
    %932 = vmatpush.msra.mxu0 0.0
    %933 = vmatpush.msra.mxu0 0.0
    %934 = vmatpush.msra.mxu0 0.0
    %935 = vmatpush.msra.mxu0 0.0
    %936 = vmatpush.msra.mxu0 0.0
    %937 = vmatpush.msra.mxu0 0.0
    %938 = vmatpush.msra.mxu0 0.0
    %939 = vmatpush.msra.mxu0 0.0
    %940 = vmatpush.msra.mxu0 0.0
    %941 = vmatpush.msra.mxu0 0.0
    %942 = vmatpush.msra.mxu0 0.0
    %943 = vmatpush.msra.mxu0 %v879
    %944 = vmatpush.msra.mxu0 %v875
    %945 = vmatpush.msra.mxu0 %v871
    %946 = vmatpush.msra.mxu0 %v867
    %947 = vmatmul.f32.gmra.mxu0 %v889
    %v948 = vpop.f32.mrf.mxu0
    %v949 = vadd.f32 %v886, %v948
    %950 = vdwg.mxu0
    %951 = vmatpush.msra.mxu0 0.0
    %952 = vmatpush.msra.mxu0 0.0
    %953 = vmatpush.msra.mxu0 0.0
    %954 = vmatpush.msra.mxu0 0.0
    %955 = vmatpush.msra.mxu0 0.0
    %956 = vmatpush.msra.mxu0 0.0
    %957 = vmatpush.msra.mxu0 0.0
    %958 = vmatpush.msra.mxu0 0.0
    %959 = vmatpush.msra.mxu0 0.0
    %960 = vmatpush.msra.mxu0 0.0
    %961 = vmatpush.msra.mxu0 0.0
    %962 = vmatpush.msra.mxu0 0.0
    %963 = vmatpush.msra.mxu0 %v880
    %964 = vmatpush.msra.mxu0 %v876
    %965 = vmatpush.msra.mxu0 %v872
    %966 = vmatpush.msra.mxu0 %v868
    %967 = vmatmul.f32.gmra.mxu0 %v889
    %v968 = vpop.f32.mrf.mxu0
    %v969 = vadd.f32 %v886, %v968
    %970 = vdwg.mxu0
    %v971 = vmax.f32 %v909, 0.0
    %v972 = vmax.f32 %v929, 0.0
    %v973 = vmax.f32 %v949, 0.0
    %v974 = vmax.f32 %v969, 0.0
    %v979 = vrot.slane %v972, 4
    %v980 = vrot.slane %v974, 4
    %v981 = vsel %vm111, %v971, %v979
    %v982 = vsel %vm111, %v973, %v980
    %985 = vst [vmem:[#allocation2] sm:$0xff] %v981
    %986 = vst [vmem:[#allocation2 + $0x8] sm:$0xff] %v982
    // Predicated region
    $region38: #{tpu_custom_call.1} parent=1 // pred_check
      _
    $region39: #{tpu_custom_call.1} parent=1 // pred_check_branch
      %988 = sbr.rel (0) target = $region41
    $region40: #{tpu_custom_call.1} parent=1 // pred_region
      %990 = vsyncadd [#allocation3], 0
      %s992 = sshll.u32 [#allocation2], 4
      %s993 = int_to_ptr.vmem [resolvable:$true] %s992
      %s994 = sshll.u32 %s9, 4
      %s995 = int_to_ptr.hbm [resolvable:$true] %s994
      %997 = dma.vmem_to_hbm [thread:$0]  %s993, 256, %s995, [#allocation3]
    $region41: #{tpu_custom_call.1} parent=1 // pred_fallthru
      _
    // Predicated region
    $region42: #{tpu_custom_call.1} parent=1 // pred_check
      _
    $region43: #{tpu_custom_call.1} parent=1 // pred_check_branch
      %999 = sbr.rel (0) target = $region45
    $region44: #{tpu_custom_call.1} parent=1 // pred_region
      %1001 = dma.done [#allocation3], 256
    $region45: #{tpu_custom_call.1} parent=1 // pred_fallthru
      _
    %1002 = vsyncpa [#allocation3], 1

</llo_original>
